<compile_context>
chip_gen: v7x
topology: tpu7x:2x2x1
jax: 0.10.0
libtpu: 0.0.40
codegen_flags: <defaults>
</compile_context>

<pallas_src>
import functools
import math

import jax
import jax.numpy as jnp
from jax import lax
from jax.experimental import pallas as pl
from jax.experimental.pallas import tpu as pltpu


def _vmem_spec():
    return pl.BlockSpec(memory_space=pltpu.MemorySpace.VMEM)


# ----------------------------------------------------------------------------
# Kernel 1: row-tiled fused linear  y = x @ w + b   (w already [in, out])
# ----------------------------------------------------------------------------
def _linear_kernel(x_ref, w_ref, b_ref, o_ref):
    o_ref[...] = (
        jnp.dot(x_ref[...], w_ref[...], preferred_element_type=jnp.float32)
        + b_ref[...]
    )


def pallas_linear(x, w_t, b_row, *, block_m=256):
    m, kdim = x.shape
    n = w_t.shape[1]
    bm = min(block_m, m)
    return pl.pallas_call(
        _linear_kernel,
        out_shape=jax.ShapeDtypeStruct((m, n), jnp.float32),
        grid=(pl.cdiv(m, bm),),
        in_specs=[
            pl.BlockSpec((bm, kdim), lambda i: (i, 0)),   # row tile of x
            pl.BlockSpec((kdim, n), lambda i: (0, 0)),    # weight stays resident
            pl.BlockSpec((1, n), lambda i: (0, 0)),       # bias stays resident
        ],
        out_specs=pl.BlockSpec((bm, n), lambda i: (i, 0)),
        compiler_params=pltpu.CompilerParams(dimension_semantics=("parallel",)),
    )(x, w_t, b_row)


# ----------------------------------------------------------------------------
# Kernel 2: multi-head TransformerConv attention, lane-dense (N, H*C) layout.
#   The fused projection (N, 4*H*C) laid out as [Q | skip | K | V] is passed
#   TWICE: once row-tiled over destination rows (Q + skip columns used), once
#   fully resident (K + V columns used).  Heads are unrolled inside the kernel.
#   score[d, s] = q_d . k_s + bias[d, s]     (1/sqrt(C) folded into Wq;
#                                             bias = 0 on edges / -1e30 off)
#   alpha       = softmax over sources (per destination row)
#   out_d       = has_in_d * sum_s alpha[d, s] v_s  +  skip_d
# ----------------------------------------------------------------------------
def _attn_kernel(qs_ref, kv_ref, bias_ref, hasin_ref, o_ref, *, heads, c):
    hc = heads * c
    kv = kv_ref[...]          # (N, 4*H*C)  full source axis; use cols [2hc:4hc]
    bias = bias_ref[...]      # (bm, N)     additive mask (0 / -1e30)

    outs = []
    for h in range(heads):
        q_h = qs_ref[:, h * c:(h + 1) * c]                        # (bm, C)
        k_h = kv[:, 2 * hc + h * c: 2 * hc + (h + 1) * c]         # (N,  C)
        v_h = kv[:, 3 * hc + h * c: 3 * hc + (h + 1) * c]         # (N,  C)
        s = lax.dot_general(q_h, k_h, (((1,), (1,)), ((), ())),
                            preferred_element_type=jnp.float32) + bias
        m = jnp.max(s, axis=-1, keepdims=True)
        p = jnp.exp(s - m)                                        # masked -> 0
        denom = jnp.sum(p, axis=-1, keepdims=True)
        alpha = p * pl.reciprocal(denom, approx=True)
        outs.append(jnp.dot(alpha, v_h, preferred_element_type=jnp.float32))

    attn = jnp.concatenate(outs, axis=1)                          # (bm, H*C)
    skip = qs_ref[:, hc:2 * hc]                                   # (bm, H*C)
    # rows with zero in-degree get 0 attention contribution -> out = skip
    o_ref[...] = attn * hasin_ref[...] + skip


def pallas_transformer_attention(qskv, bias, has_in, *, heads, c, block_q=256):
    n, w = qskv.shape                      # w = 4 * heads * c
    hc = heads * c
    bm = min(block_q, n)
    return pl.pallas_call(
        functools.partial(_attn_kernel, heads=heads, c=c),
        out_shape=jax.ShapeDtypeStruct((n, hc), jnp.float32),
        grid=(pl.cdiv(n, bm),),
        in_specs=[
            pl.BlockSpec((bm, w), lambda i: (i, 0)),      # qskv row tile (Q, skip)
            pl.BlockSpec((n, w), lambda i: (0, 0)),       # qskv resident  (K, V)
            pl.BlockSpec((bm, n), lambda i: (i, 0)),      # additive mask bias
            pl.BlockSpec((bm, 1), lambda i: (i, 0)),      # has-incoming-edge flag
        ],
        out_specs=pl.BlockSpec((bm, hc), lambda i: (i, 0)),
        compiler_params=pltpu.CompilerParams(dimension_semantics=("parallel",)),
    )(qskv, qskv, bias, has_in)


# ----------------------------------------------------------------------------
# Kernel 3: BatchNorm (batch stats) + ReLU + segment max / mean pool + lin_out
#   mean pool = normalized one-hot (B,N) @ (N,D)      (single MXU matmul)
#   max  pool = per-graph max over (hr + additive -1e30 mask column)
#   g_out     = [xmp | xap | g] @ Wo^T + bo            (folded epilogue)
# ----------------------------------------------------------------------------
def _bn_relu_pool_out_kernel(h_ref, gamma_ref, beta_ref, mmean_ref, mbias_ref,
                             g_ref, wo_ref, bo_ref, h_out_ref, g_out_ref,
                             *, num_graphs, eps):
    h = h_ref[...]                                            # (N, D)
    mean = jnp.mean(h, axis=0, keepdims=True)
    var = jnp.mean((h - mean) ** 2, axis=0, keepdims=True)    # biased, as BatchNorm1d
    scale = gamma_ref[...] * lax.rsqrt(var + eps)             # fused BN scale
    shift = beta_ref[...] - mean * scale                      # fused BN shift
    hr = jnp.maximum(h * scale + shift, 0.0)
    h_out_ref[...] = hr

    # global mean pool: normalized one-hot (B, N) @ (N, D)
    xap = jnp.dot(mmean_ref[...], hr, preferred_element_type=jnp.float32)

    # global max pool: additive -1e30 bias per graph column, unrolled over B
    # TODO(synk): for large N / many graphs switch to a scalar-prefetch
    # segment-offset formulation instead of the O(B*N*D) unrolled loop.
    rows = []
    for b in range(num_graphs):
        biased = hr + mbias_ref[:, b:b + 1]                   # (N, D)
        rows.append(jnp.max(biased, axis=0, keepdims=True))
    xmp = jnp.concatenate(rows, axis=0)                       # (B, D)

    # lin_out folded in: [xmp | xap | g] @ Wo_t + bo
    pcat = jnp.concatenate([xmp, xap, g_ref[...]], axis=1)    # (B, 2D + Ge)
    g_out_ref[...] = (
        jnp.dot(pcat, wo_ref[...], preferred_element_type=jnp.float32)
        + bo_ref[...]
    )


def pallas_bn_relu_pool_out(h, gamma_row, beta_row, mmean, mbias, g, wo_t, bo,
                            *, num_graphs, eps=1e-5):
    n, d = h.shape
    go = wo_t.shape[1]
    return pl.pallas_call(
        functools.partial(_bn_relu_pool_out_kernel,
                          num_graphs=num_graphs, eps=eps),
        out_shape=(
            jax.ShapeDtypeStruct((n, d), jnp.float32),
            jax.ShapeDtypeStruct((num_graphs, go), jnp.float32),
        ),
        in_specs=[_vmem_spec()] * 8,
        out_specs=(_vmem_spec(), _vmem_spec()),
    )(h, gamma_row, beta_row, mmean, mbias, g, wo_t, bo)


# ----------------------------------------------------------------------------
# Parameter preparation (done ONCE, outside the forward path):
#   - pre-transpose all weights to [in, out]
#   - fuse Q/skip/K/V weights & biases column-wise for a single projection GEMM
#   - fold the 1/sqrt(C) attention scale into the Q weights & bias
# ----------------------------------------------------------------------------
def prepare_params(raw, *, out_channels):
    qscale = 1.0 / math.sqrt(out_channels)
    p = {}
    p["Wg_t"] = raw["Wg"].T
    p["bg"] = raw["bg"][None, :]
    p["Wqskv_t"] = jnp.concatenate(
        [raw["Wq"].T * qscale, raw["Ws"].T, raw["Wk"].T, raw["Wv"].T], axis=1)
    p["bqskv"] = jnp.concatenate(
        [raw["bq"] * qscale, raw["bs"], raw["bk"], raw["bv"]])[None, :]
    p["gamma"] = raw["gamma"][None, :]
    p["beta"] = raw["beta"][None, :]
    p["Wo_t"] = raw["Wo"].T
    p["bo"] = raw["bo"][None, :]
    return p


# ----------------------------------------------------------------------------
# Full forward
# ----------------------------------------------------------------------------
def transformer_conv_v2_forward(x, edge_index, global_attr, batch_index, params,
                                *, heads, out_channels, num_graphs):
    f32 = jnp.float32
    n = x.shape[0]
    c = out_channels

    # lin_global
    g = pallas_linear(global_attr, params["Wg_t"], params["bg"])

    # broadcast per-graph embedding to nodes and concat (glue)
    gb = jnp.take(g, batch_index, axis=0)
    h_in = jnp.concatenate([x, gb], axis=1)

    # fused Q/skip/K/V projection: one GEMM, h_in read once -> (N, 4*H*C)
    qskv = pallas_linear(h_in, params["Wqskv_t"], params["bqskv"])

    # dense adjacency adj[dst, src] -> additive mask bias + in-degree flag
    src, dst = edge_index[0], edge_index[1]
    adj = jnp.zeros((n, n), f32).at[dst, src].set(1.0)
    bias = (adj - 1.0) * 1e30                                   # 0 on edges, -1e30 off
    has_in = (jnp.sum(adj, axis=1, keepdims=True) > 0.0).astype(f32)

    h_gnn = pallas_transformer_attention(qskv, bias, has_in,
                                         heads=heads, c=c)      # (N, H*C)

    # pooling masks (glue): normalized one-hot for mean, additive bias for max
    mask_bn = (batch_index[None, :] == jnp.arange(num_graphs)[:, None]).astype(f32)
    counts = jnp.sum(mask_bn, axis=1, keepdims=True)
    mmean = mask_bn / jnp.maximum(counts, 1.0)                  # (B, N)
    mbias = (mask_bn.T - 1.0) * 1e30                            # (N, B)

    h_act, g_out = pallas_bn_relu_pool_out(
        h_gnn, params["gamma"], params["beta"], mmean, mbias,
        g, params["Wo_t"], params["bo"], num_graphs=num_graphs)
    return g_out, h_act


if __name__ == "__main__":
    key = jax.random.PRNGKey(0)

    # small, module-consistent shapes
    num_nodes = 8
    num_graphs = 2
    in_channels = 10
    global_dim_in = 6
    global_emb_dim = 4
    global_dim_out = 5
    heads = 2
    out_channels = 8                      # per-head
    gnn_in = in_channels + global_emb_dim
    gnn_out = out_channels * heads        # concat=True

    keys = jax.random.split(key, 16)

    def randn(k, shape, scale=0.2):
        return (scale * jax.random.normal(k, shape)).astype(jnp.float32)

    # deterministic synthetic parameters (shapes from the module __init__)
    raw_params = dict(
        Wg=randn(keys[2], (global_emb_dim, global_dim_in)),
        bg=randn(keys[3], (global_emb_dim,)),
        Wq=randn(keys[4], (heads * out_channels, gnn_in)),
        bq=randn(keys[5], (heads * out_channels,)),
        Wk=randn(keys[6], (heads * out_channels, gnn_in)),
        bk=randn(keys[7], (heads * out_channels,)),
        Wv=randn(keys[8], (heads * out_channels, gnn_in)),
        bv=randn(keys[9], (heads * out_channels,)),
        Ws=randn(keys[10], (heads * out_channels, gnn_in)),   # lin_skip (root_weight)
        bs=randn(keys[11], (heads * out_channels,)),
        gamma=jnp.ones((gnn_out,), jnp.float32),
        beta=jnp.zeros((gnn_out,), jnp.float32),
        Wo=randn(keys[12], (global_dim_out, gnn_out * 2 + global_emb_dim)),
        bo=randn(keys[13], (global_dim_out,)),
    )
    params = prepare_params(raw_params, out_channels=out_channels)

    # inputs
    x = randn(keys[0], (num_nodes, in_channels), 1.0)
    global_attr = randn(keys[1], (num_graphs, global_dim_in), 1.0)
    batch_index = jnp.array([0, 0, 0, 0, 1, 1, 1, 1], dtype=jnp.int32)
    # edge_index: row 0 = source, row 1 = destination (PyG convention)
    edge_index = jnp.array(
        [[0, 1, 2, 3, 1, 4, 5, 6, 7, 5],
         [1, 2, 3, 0, 0, 5, 6, 7, 4, 4]], dtype=jnp.int32)
    # TODO(synk): edge_dim / edge_attr path and dropout>0 are not exercised
    # (module defaults edge_dim=None, dropout=0.0); BatchNorm running-stat
    # updates are stateful and omitted (training-mode batch statistics used).

    g_out, h_out = transformer_conv_v2_forward(
        x, edge_index, global_attr, batch_index, params,
        heads=heads, out_channels=out_channels, num_graphs=num_graphs)

    jax.block_until_ready((g_out, h_out))
    assert g_out.shape == (num_graphs, global_dim_out)
    assert h_out.shape == (num_nodes, gnn_out)
    assert bool(jnp.all(jnp.isfinite(g_out))) and bool(jnp.all(jnp.isfinite(h_out)))
    print("KERNEL_OK")
</pallas_src>

<mosaic_0001>
module attributes {stable_mosaic.version = 11 : i64} {
  func.func @_linear_kernel(%arg0: i32, %arg1: memref<2x6xf32, #tpu.memory_space<vmem>>, %arg2: memref<6x4xf32, #tpu.memory_space<vmem>>, %arg3: memref<1x4xf32, #tpu.memory_space<vmem>>, %arg4: memref<2x4xf32, #tpu.memory_space<vmem>>) attributes {dimension_semantics = [#tpu.dimension_semantics<parallel>], iteration_bounds = array<i64: 1>, scalar_prefetch = 0 : i64, scratch_operands = 0 : i64, tpu.core_type = #tpu.core_type<tc>, window_params = [{transform_indices = @transform_0, window_bounds = array<i64: 2, 6>}, {pipeline_mode = #tpu.pipeline_mode<synchronous>, transform_indices = @transform_1, window_bounds = array<i64: 6, 4>}, {pipeline_mode = #tpu.pipeline_mode<synchronous>, transform_indices = @transform_2, window_bounds = array<i64: 1, 4>}, {transform_indices = @transform_3, window_bounds = array<i64: 2, 4>}]} {
    %c0 = arith.constant 0 : index
    %c0_0 = arith.constant 0 : index
    %0 = vector.load %arg1[%c0, %c0_0] : memref<2x6xf32, #tpu.memory_space<vmem>>, vector<2x6xf32>
    %c0_1 = arith.constant 0 : index
    %c0_2 = arith.constant 0 : index
    %1 = vector.load %arg2[%c0_1, %c0_2] : memref<6x4xf32, #tpu.memory_space<vmem>>, vector<6x4xf32>
    %cst = arith.constant dense<0.000000e+00> : vector<2x4xf32>
    %2 = tpu.matmul %0, %1, %cst {dimension_numbers = #tpu.dot_dimension_numbers<[1], [0], [0], [1], [0, 0, 1, 1], [], []>} : vector<2x6xf32>, vector<6x4xf32>, vector<2x4xf32> -> vector<2x4xf32>
    %c0_3 = arith.constant 0 : index
    %c0_4 = arith.constant 0 : index
    %3 = vector.load %arg3[%c0_3, %c0_4] : memref<1x4xf32, #tpu.memory_space<vmem>>, vector<1x4xf32>
    %4 = vector.broadcast %3 : vector<1x4xf32> to vector<2x4xf32>
    %5 = arith.addf %2, %4 : vector<2x4xf32>
    %c0_5 = arith.constant 0 : index
    %c0_6 = arith.constant 0 : index
    %6 = vector.load %arg4[%c0_5, %c0_6] : memref<2x4xf32, #tpu.memory_space<vmem>>, vector<2x4xf32>
    tpu.vector_store %arg4[%c0_5, %c0_6], %5 {strides = array<i32>} : memref<2x4xf32, #tpu.memory_space<vmem>>, vector<2x4xf32>,
    return
  }
  func.func @transform_0(%arg0: i32) -> (i32, i32) {
    %c0_i32 = arith.constant 0 : i32
    %c0_i32_0 = arith.constant 0 : i32
    return %arg0, %c0_i32 : i32, i32
  }
  func.func @transform_1(%arg0: i32) -> (i32, i32) {
    %c0_i32 = arith.constant 0 : i32
    %c0_i32_0 = arith.constant 0 : i32
    %c0_i32_1 = arith.constant 0 : i32
    return %c0_i32, %c0_i32_0 : i32, i32
  }
  func.func @transform_2(%arg0: i32) -> (i32, i32) {
    %c0_i32 = arith.constant 0 : i32
    %c0_i32_0 = arith.constant 0 : i32
    %c0_i32_1 = arith.constant 0 : i32
    return %c0_i32, %c0_i32_0 : i32, i32
  }
  func.func @transform_3(%arg0: i32) -> (i32, i32) {
    %c0_i32 = arith.constant 0 : i32
    %c0_i32_0 = arith.constant 0 : i32
    return %arg0, %c0_i32 : i32, i32
  }
}

</mosaic_0001>

<llo_original>
// kernel: tpu_custom_call.1
$region0: #{tpu_custom_call.1}
  #allocation0 [shape = 'u32[]', space=smem, size = 0x4, offset = 0x4, fixed_abs, tag = 'smem constant byte address 0x4 - core index']
  #allocation1 [shape = 'u32[144,128]{1,0:T(1,128)}', space=vmem, size = 0x12000, scoped, tag = 'internal scratch']
  %s0 = inlined_call_operand.vmem [shape: f32[2,6], index: 0, kind: input, shape index: {}]
  %s1 = inlined_call_operand.vmem [shape: f32[6,4], index: 1, kind: input, shape index: {}]
  %s2 = inlined_call_operand.vmem [shape: f32[1,4], index: 2, kind: input, shape index: {}]
  %s3 = inlined_call_operand.hbm [shape: f32[2,4], index: 3, kind: output, shape index: {}]
  %s4 = sld [smem:[#allocation0]]
  $region22: #{tpu_custom_call.1} parent=0
    _
  %s6 = ssub.s32 1, %s4
  %s7 = scalar_select 0, %s6, %s4
  $region1: #{tpu_custom_call.1} parent=0
    #allocation2 [shape = 'u8[1024]{0}', space=vmem, size = 0x400, scoped, tag = 'output window, operand 0, single buffered']
    #allocation3 [shape = 's32[1]{0}', space=sflag, size = 0x4, scoped, tag = 'scoped memory for tpu_custom_call.1']
    %8 = vsyncpa [#allocation3], 0
    // Predicated region
    $region2: #{tpu_custom_call.1} parent=1 // pred_check
      _
    $region3: #{tpu_custom_call.1} parent=1 // pred_check_branch
      %10 = sbr.rel (0) target = $region5
    $region4: #{tpu_custom_call.1} parent=1 // pred_region
      _
    $region5: #{tpu_custom_call.1} parent=1 // pred_fallthru
      _
    // Predicated region
    $region6: #{tpu_custom_call.1} parent=1 // pred_check
      _
    $region7: #{tpu_custom_call.1} parent=1 // pred_check_branch
      %12 = sbr.rel (0) target = $region9
    $region8: #{tpu_custom_call.1} parent=1 // pred_region
      _
    $region9: #{tpu_custom_call.1} parent=1 // pred_fallthru
      _
    // Predicated region
    $region10: #{tpu_custom_call.1} parent=1 // pred_check
      _
    $region11: #{tpu_custom_call.1} parent=1 // pred_check_branch
      %14 = sbr.rel (0) target = $region13
    $region12: #{tpu_custom_call.1} parent=1 // pred_region
      _
    $region13: #{tpu_custom_call.1} parent=1 // pred_fallthru
      _
    %v15 = vld [vmem:[%s0] sm:$0x3]
    %v16 = vld [vmem:[%s1] sm:$0x3f]
    %v17 = vld [vmem:[%s2] sm:$0x1]
    %v19 = vlaneseq
    %v20 = vshrl.u32 %v19, 7
    %v21 = vsub.s32 0, %v20
    %v22 = vrot.slane %v17, %v21
    %vm24 = vcmask 48128
    %v26 = vsel %vm24, %v15, 0
    %vm28 = vcmask 1045504
    %v30 = vsel %vm28, %v16, 0
    %32 = vmatprep.subr.mxu0 0.0
    %33 = vmatpush1.msra.mxu0 %v30
    %34 = vmatprep.subr.mxu0 0.0
    %35 = vmatpush1.msra.mxu0 0.0
    %36 = vmatprep.subr.mxu0 0.0
    %37 = vmatpush1.msra.mxu0 0.0
    %38 = vmatprep.subr.mxu0 0.0
    %39 = vmatpush1.msra.mxu0 0.0
    %40 = vmatprep.subr.mxu0 0.0
    %41 = vmatpush1.msra.mxu0 0.0
    %42 = vmatprep.subr.mxu0 0.0
    %43 = vmatpush1.msra.mxu0 0.0
    %44 = vmatprep.subr.mxu0 0.0
    %45 = vmatpush1.msra.mxu0 0.0
    %46 = vmatprep.subr.mxu0 0.0
    %47 = vmatpush1.msra.mxu0 0.0
    %48 = vmatprep.subr.mxu0 0.0
    %49 = vmatpush1.msra.mxu0 0.0
    %50 = vmatprep.subr.mxu0 0.0
    %51 = vmatpush1.msra.mxu0 0.0
    %52 = vmatprep.subr.mxu0 0.0
    %53 = vmatpush1.msra.mxu0 0.0
    %54 = vmatprep.subr.mxu0 0.0
    %55 = vmatpush1.msra.mxu0 0.0
    %56 = vmatprep.subr.mxu0 0.0
    %57 = vmatpush1.msra.mxu0 0.0
    %58 = vmatprep.subr.mxu0 0.0
    %59 = vmatpush1.msra.mxu0 0.0
    %60 = vmatprep.subr.mxu0 0.0
    %61 = vmatpush1.msra.mxu0 0.0
    %62 = vmatprep.subr.mxu0 0.0
    %63 = vmatpush1.msra.mxu0 0.0
    %64 = vmatprep.subr.mxu0 0.0
    %65 = vmatpush1.msra.mxu0 0.0
    %66 = vmatprep.subr.mxu0 0.0
    %67 = vmatpush1.msra.mxu0 0.0
    %68 = vmatprep.subr.mxu0 0.0
    %69 = vmatpush1.msra.mxu0 0.0
    %70 = vmatprep.subr.mxu0 0.0
    %71 = vmatpush1.msra.mxu0 0.0
    %72 = vmatprep.subr.mxu0 0.0
    %73 = vmatpush1.msra.mxu0 0.0
    %74 = vmatprep.subr.mxu0 0.0
    %75 = vmatpush1.msra.mxu0 0.0
    %76 = vmatprep.subr.mxu0 0.0
    %77 = vmatpush1.msra.mxu0 0.0
    %78 = vmatprep.subr.mxu0 0.0
    %79 = vmatpush1.msra.mxu0 0.0
    %80 = vmatprep.subr.mxu0 0.0
    %81 = vmatpush1.msra.mxu0 0.0
    %82 = vmatprep.subr.mxu0 0.0
    %83 = vmatpush1.msra.mxu0 0.0
    %84 = vmatprep.subr.mxu0 0.0
    %85 = vmatpush1.msra.mxu0 0.0
    %86 = vmatprep.subr.mxu0 0.0
    %87 = vmatpush1.msra.mxu0 0.0
    %88 = vmatprep.subr.mxu0 0.0
    %89 = vmatpush1.msra.mxu0 0.0
    %90 = vmatprep.subr.mxu0 0.0
    %91 = vmatpush1.msra.mxu0 0.0
    %92 = vmatprep.subr.mxu0 0.0
    %93 = vmatpush1.msra.mxu0 0.0
    %94 = vmatprep.subr.mxu0 0.0
    %95 = vmatpush1.msra.mxu0 0.0
    %96 = vmatprep.mubr.f32.mxu0 0.0
    %97 = vmatmul.mubr.f32.gmra.mrb[0].mxu0 %v26
    %v98 = vpop.f32.mrb[0].mxu0
    %v99 = vadd.f32 %v22, %v98
    %v100 = vpop.f32.mrb[0].mxu0
    %101 = vdwg.mxu0
    %vm102 = vcmask 25600
    %103 = vst.msk [vmem:[#allocation2] sm:$0x3] %vm102, %v99
    // Predicated region
    $region14: #{tpu_custom_call.1} parent=1 // pred_check
      _
    $region15: #{tpu_custom_call.1} parent=1 // pred_check_branch
      %105 = sbr.rel (0) target = $region17
    $region16: #{tpu_custom_call.1} parent=1 // pred_region
      %s107 = ssub.s32 32, 32
      %108 = vsyncadd [#allocation3], %s107
      %s110 = sshll.u32 [#allocation2], 4
      %s111 = int_to_ptr.vmem [resolvable:$true] %s110
      %113 = dma.vmem_to_hbm [thread:$0]  %s111, 32, %s3, [#allocation3]
    $region17: #{tpu_custom_call.1} parent=1 // pred_fallthru
      _
    // Predicated region
    $region18: #{tpu_custom_call.1} parent=1 // pred_check
      _
    $region19: #{tpu_custom_call.1} parent=1 // pred_check_branch
      %115 = sbr.rel (0) target = $region21
    $region20: #{tpu_custom_call.1} parent=1 // pred_region
      %116 = dma.done [#allocation3], 32
    $region21: #{tpu_custom_call.1} parent=1 // pred_fallthru
      _
    %117 = vsyncpa [#allocation3], 1

</llo_original>
